<compile_context>
chip_gen: v7x
topology: tpu7x:2x2x1
jax: 0.10.0
libtpu: 0.0.40
codegen_flags: <defaults>
</compile_context>

<pallas_src>
import jax
import jax.numpy as jnp
from jax import lax
from jax.experimental import pallas as pl
from jax.experimental.pallas import tpu as pltpu

N_IN = 3                    # per-number features: val, sig, exp
HIDDEN = 32                 # ValueEmbedding hidden size
EMB = 32                    # config.emb_size
PACK = 4                    # tokens packed per 128-lane row
PACKED_IN = PACK * N_IN     # 12
PACKED_EMB = PACK * EMB     # 128
LN_EPS = 1e-5               # nn.LayerNorm default eps
MAX_TILE_R = 2048           # packed rows per grid step (= 8192 tokens)


def _round_up(x, m):
    return ((x + m - 1) // m) * m


def _cdiv(a, b):
    return (a + b - 1) // b


def _block_diag4(w):
    """Replicate w along the diagonal of a 4x-larger matrix."""
    r, c = w.shape
    bd = jnp.zeros((PACK * r, PACK * c), w.dtype)
    for p in range(PACK):
        bd = bd.at[p * r:(p + 1) * r, p * c:(p + 1) * c].set(w)
    return bd


def numbed_kernel(x_ref, w1_ref, b1_ref, w2_ref, b2_ref, g_ref, beta_ref,
                  s_ref, o_ref):
    # x: [T, 12]   w1: [12, 128]   w2: [128, 128]   s: [128, 128]
    # b1 / b2 / g / beta: [1, 128]
    x = x_ref[...]

    # Layer 1 + layer 2 on the MXU, f32 accumulation.  The block-diagonal
    # weights keep the 4 packed tokens in a row completely independent.
    h = jnp.tanh(
        jnp.dot(x, w1_ref[...], preferred_element_type=jnp.float32)
        + b1_ref[...])                                            # EUP tanh
    e = jnp.dot(h, w2_ref[...], preferred_element_type=jnp.float32) + b2_ref[...]

    # LayerNorm stats on the MXU: s = blockdiag4(ones(32,32)/32), so each
    # 32-lane segment gets its own mean / var, already broadcast across its
    # lanes (no cross-lane XLU reduce, no re-broadcast, no token leakage).
    s = s_ref[...]
    mean = jnp.dot(e, s, preferred_element_type=jnp.float32)
    cen = e - mean
    var = jnp.dot(cen * cen, s, preferred_element_type=jnp.float32)
    normed = cen * lax.rsqrt(var + LN_EPS)
    o_ref[...] = (normed * g_ref[...] + beta_ref[...]).astype(o_ref.dtype)


def numbed_forward(input_dict, params, out_dtype=jnp.float32):
    """NumBed.forward for the ValueEmbedding config (use_layer_norm=True)."""
    if len(input_dict) == 0:
        return jnp.zeros((0, EMB), dtype=out_dtype)

    val = input_dict["batch_val"].astype(jnp.float32)   # [N]
    sig = input_dict["batch_sig"].astype(jnp.float32)   # [N]
    exp = input_dict["batch_exp"].astype(jnp.float32)   # [N]
    n = val.shape[0]
    if n == 0:
        return jnp.zeros((0, EMB), dtype=out_dtype)

    w1, b1, w2, b2, gamma, beta = params

    # Packed, VMEM-resident operands.
    w1_bd = _block_diag4(w1)                                        # [12, 128]
    w2_bd = _block_diag4(w2)                                        # [128, 128]
    s_bd = _block_diag4(jnp.full((EMB, EMB), 1.0 / EMB, jnp.float32))  # [128,128]
    b1_t = jnp.tile(b1, (1, PACK))                                  # [1, 128]
    b2_t = jnp.tile(b2, (1, PACK))
    g_t = jnp.tile(gamma, (1, PACK))
    beta_t = jnp.tile(beta, (1, PACK))

    # Single packed feature slab: [N, 3] -> (pad) -> [R, 12] (free reshape).
    feats = jnp.stack([val, sig, exp], axis=-1)                     # [N, 3]

    r = _cdiv(n, PACK)
    r8 = _round_up(r, 8)
    steps = _cdiv(r8, MAX_TILE_R)
    if steps == 1 and r8 >= 16:
        steps = 2                       # >= 2 balanced steps for v7x megacore
    tile_r = _round_up(_cdiv(r8, steps), 8)
    r_pad = tile_r * steps
    n_pad = r_pad * PACK
    if n_pad != n:
        # Zero padding is benign: padded segments get finite LN output (eps
        # guards the variance) and are sliced off below.
        feats = jnp.pad(feats, ((0, n_pad - n), (0, 0)))
    x_packed = feats.reshape(r_pad, PACKED_IN)

    resident = lambda shape: pl.BlockSpec(shape, lambda i: (0, 0))

    out = pl.pallas_call(
        numbed_kernel,
        out_shape=jax.ShapeDtypeStruct((r_pad, PACKED_EMB), out_dtype),
        grid=(steps,),
        in_specs=[
            pl.BlockSpec((tile_r, PACKED_IN), lambda i: (i, 0)),    # packed x
            resident((PACKED_IN, PACKED_EMB)),                      # w1_bd
            resident((1, PACKED_EMB)),                              # b1
            resident((PACKED_EMB, PACKED_EMB)),                     # w2_bd
            resident((1, PACKED_EMB)),                              # b2
            resident((1, PACKED_EMB)),                              # gamma
            resident((1, PACKED_EMB)),                              # beta
            resident((PACKED_EMB, PACKED_EMB)),                     # LN stats mat
        ],
        out_specs=pl.BlockSpec((tile_r, PACKED_EMB), lambda i: (i, 0)),
        compiler_params=pltpu.CompilerParams(
            dimension_semantics=("parallel",)),
    )(x_packed, w1_bd, b1_t, w2_bd, b2_t, g_t, beta_t, s_bd)

    # Free reshape back to token-major [n, EMB].
    return out.reshape(n_pad, EMB)[:n]


def numbed_reference(input_dict, params):
    """Pure-JAX reference of the same forward (for correctness check)."""
    val = input_dict["batch_val"].astype(jnp.float32)
    sig = input_dict["batch_sig"].astype(jnp.float32)
    exp = input_dict["batch_exp"].astype(jnp.float32)
    feats = jnp.stack([val, sig, exp], axis=-1)
    w1, b1, w2, b2, gamma, beta = params
    h = jnp.tanh(jnp.dot(feats, w1, precision=lax.Precision.HIGHEST) + b1)
    e = jnp.dot(h, w2, precision=lax.Precision.HIGHEST) + b2
    mean = jnp.mean(e, axis=-1, keepdims=True)
    var = jnp.mean((e - mean) ** 2, axis=-1, keepdims=True)
    return (e - mean) / jnp.sqrt(var + LN_EPS) * gamma + beta


def init_params(key):
    k1, k2, k3, k4 = jax.random.split(key, 4)
    w1 = jax.random.normal(k1, (N_IN, HIDDEN), jnp.float32) * 0.1
    b1 = jax.random.normal(k2, (1, HIDDEN), jnp.float32) * 0.01
    w2 = jax.random.normal(k3, (HIDDEN, EMB), jnp.float32) * 0.1
    b2 = jax.random.normal(k4, (1, EMB), jnp.float32) * 0.01
    gamma = jnp.ones((1, EMB), jnp.float32)   # nn.LayerNorm weight init
    beta = jnp.zeros((1, EMB), jnp.float32)   # nn.LayerNorm bias init
    return (w1, b1, w2, b2, gamma, beta)


def _make_inputs(key, n):
    kv, ks, ke = jax.random.split(key, 3)
    return {
        "batch_val": jax.random.normal(kv, (n,), jnp.float32) * 10.0,
        "batch_sig": jax.random.normal(ks, (n,), jnp.float32),
        "batch_exp": jax.random.randint(ke, (n,), -3, 4).astype(jnp.float32),
    }


if __name__ == "__main__":
    key = jax.random.PRNGKey(0)
    pkey, dkey1, dkey2 = jax.random.split(key, 3)
    params = init_params(pkey)

    # Small batch (single grid step, ragged vs. the 4-token packing).
    n1 = 8
    input_dict1 = _make_inputs(dkey1, n1)
    out1 = jax.block_until_ready(numbed_forward(input_dict1, params))
    ref1 = numbed_reference(input_dict1, params)
    assert out1.shape == (n1, EMB), out1.shape
    assert jnp.allclose(out1, ref1, atol=2e-4, rtol=2e-4), "mismatch (n=8)"

    # Multi-step batch with a ragged tail (exercises the N grid + packing
    # + padding + the 2-step v7x-friendly tile derivation).
    n2 = 2500
    input_dict2 = _make_inputs(dkey2, n2)
    out2 = jax.block_until_ready(numbed_forward(input_dict2, params))
    ref2 = numbed_reference(input_dict2, params)
    assert out2.shape == (n2, EMB), out2.shape
    assert jnp.allclose(out2, ref2, atol=2e-4, rtol=2e-4), "mismatch (n=2500)"

    print("KERNEL_OK")
</pallas_src>

<mosaic_0001>
module attributes {stable_mosaic.version = 11 : i64} {
  func.func @numbed_kernel(%arg0: i32, %arg1: memref<8x12xf32, #tpu.memory_space<vmem>>, %arg2: memref<12x128xf32, #tpu.memory_space<vmem>>, %arg3: memref<1x128xf32, #tpu.memory_space<vmem>>, %arg4: memref<128x128xf32, #tpu.memory_space<vmem>>, %arg5: memref<1x128xf32, #tpu.memory_space<vmem>>, %arg6: memref<1x128xf32, #tpu.memory_space<vmem>>, %arg7: memref<1x128xf32, #tpu.memory_space<vmem>>, %arg8: memref<128x128xf32, #tpu.memory_space<vmem>>, %arg9: memref<8x128xf32, #tpu.memory_space<vmem>>) attributes {dimension_semantics = [#tpu.dimension_semantics<parallel>], iteration_bounds = array<i64: 1>, scalar_prefetch = 0 : i64, scratch_operands = 0 : i64, tpu.core_type = #tpu.core_type<tc>, window_params = [{transform_indices = @transform_0, window_bounds = array<i64: 8, 12>}, {pipeline_mode = #tpu.pipeline_mode<synchronous>, transform_indices = @transform_1, window_bounds = array<i64: 12, 128>}, {pipeline_mode = #tpu.pipeline_mode<synchronous>, transform_indices = @transform_2, window_bounds = array<i64: 1, 128>}, {pipeline_mode = #tpu.pipeline_mode<synchronous>, transform_indices = @transform_3, window_bounds = array<i64: 128, 128>}, {pipeline_mode = #tpu.pipeline_mode<synchronous>, transform_indices = @transform_4, window_bounds = array<i64: 1, 128>}, {pipeline_mode = #tpu.pipeline_mode<synchronous>, transform_indices = @transform_5, window_bounds = array<i64: 1, 128>}, {pipeline_mode = #tpu.pipeline_mode<synchronous>, transform_indices = @transform_6, window_bounds = array<i64: 1, 128>}, {pipeline_mode = #tpu.pipeline_mode<synchronous>, transform_indices = @transform_7, window_bounds = array<i64: 128, 128>}, {transform_indices = @transform_8, window_bounds = array<i64: 8, 128>}]} {
    %c0 = arith.constant 0 : index
    %c0_0 = arith.constant 0 : index
    %0 = vector.load %arg1[%c0, %c0_0] : memref<8x12xf32, #tpu.memory_space<vmem>>, vector<8x12xf32>
    %c0_1 = arith.constant 0 : index
    %c0_2 = arith.constant 0 : index
    %1 = vector.load %arg2[%c0_1, %c0_2] : memref<12x128xf32, #tpu.memory_space<vmem>>, vector<12x128xf32>
    %cst = arith.constant dense<0.000000e+00> : vector<8x128xf32>
    %2 = tpu.matmul %0, %1, %cst {dimension_numbers = #tpu.dot_dimension_numbers<[1], [0], [0], [1], [0, 0, 1, 1], [], []>} : vector<8x12xf32>, vector<12x128xf32>, vector<8x128xf32> -> vector<8x128xf32>
    %c0_3 = arith.constant 0 : index
    %c0_4 = arith.constant 0 : index
    %3 = vector.load %arg3[%c0_3, %c0_4] : memref<1x128xf32, #tpu.memory_space<vmem>>, vector<1x128xf32>
    %4 = vector.broadcast %3 : vector<1x128xf32> to vector<8x128xf32>
    %5 = arith.addf %2, %4 : vector<8x128xf32>
    %6 = math.tanh %5 : vector<8x128xf32>
    %c0_5 = arith.constant 0 : index
    %c0_6 = arith.constant 0 : index
    %7 = vector.load %arg4[%c0_5, %c0_6] : memref<128x128xf32, #tpu.memory_space<vmem>>, vector<128x128xf32>
    %cst_7 = arith.constant dense<0.000000e+00> : vector<8x128xf32>
    %8 = tpu.matmul %6, %7, %cst_7 {dimension_numbers = #tpu.dot_dimension_numbers<[1], [0], [0], [1], [0, 0, 1, 1], [], []>} : vector<8x128xf32>, vector<128x128xf32>, vector<8x128xf32> -> vector<8x128xf32>
    %c0_8 = arith.constant 0 : index
    %c0_9 = arith.constant 0 : index
    %9 = vector.load %arg5[%c0_8, %c0_9] : memref<1x128xf32, #tpu.memory_space<vmem>>, vector<1x128xf32>
    %10 = vector.broadcast %9 : vector<1x128xf32> to vector<8x128xf32>
    %11 = arith.addf %8, %10 : vector<8x128xf32>
    %c0_10 = arith.constant 0 : index
    %c0_11 = arith.constant 0 : index
    %12 = vector.load %arg8[%c0_10, %c0_11] : memref<128x128xf32, #tpu.memory_space<vmem>>, vector<128x128xf32>
    %cst_12 = arith.constant dense<0.000000e+00> : vector<8x128xf32>
    %13 = tpu.matmul %11, %12, %cst_12 {dimension_numbers = #tpu.dot_dimension_numbers<[1], [0], [0], [1], [0, 0, 1, 1], [], []>} : vector<8x128xf32>, vector<128x128xf32>, vector<8x128xf32> -> vector<8x128xf32>
    %14 = arith.subf %11, %13 : vector<8x128xf32>
    %15 = arith.mulf %14, %14 : vector<8x128xf32>
    %cst_13 = arith.constant dense<0.000000e+00> : vector<8x128xf32>
    %16 = tpu.matmul %15, %12, %cst_13 {dimension_numbers = #tpu.dot_dimension_numbers<[1], [0], [0], [1], [0, 0, 1, 1], [], []>} : vector<8x128xf32>, vector<128x128xf32>, vector<8x128xf32> -> vector<8x128xf32>
    %cst_14 = arith.constant 9.99999974E-6 : f32
    %17 = vector.broadcast %cst_14 : f32 to vector<8x128xf32>
    %18 = arith.addf %16, %17 : vector<8x128xf32>
    %19 = math.rsqrt %18 : vector<8x128xf32>
    %20 = arith.mulf %14, %19 : vector<8x128xf32>
    %c0_15 = arith.constant 0 : index
    %c0_16 = arith.constant 0 : index
    %21 = vector.load %arg6[%c0_15, %c0_16] : memref<1x128xf32, #tpu.memory_space<vmem>>, vector<1x128xf32>
    %22 = vector.broadcast %21 : vector<1x128xf32> to vector<8x128xf32>
    %23 = arith.mulf %20, %22 : vector<8x128xf32>
    %c0_17 = arith.constant 0 : index
    %c0_18 = arith.constant 0 : index
    %24 = vector.load %arg7[%c0_17, %c0_18] : memref<1x128xf32, #tpu.memory_space<vmem>>, vector<1x128xf32>
    %25 = vector.broadcast %24 : vector<1x128xf32> to vector<8x128xf32>
    %26 = arith.addf %23, %25 : vector<8x128xf32>
    %c0_19 = arith.constant 0 : index
    %c0_20 = arith.constant 0 : index
    %27 = vector.load %arg9[%c0_19, %c0_20] : memref<8x128xf32, #tpu.memory_space<vmem>>, vector<8x128xf32>
    tpu.vector_store %arg9[%c0_19, %c0_20], %26 {strides = array<i32>} : memref<8x128xf32, #tpu.memory_space<vmem>>, vector<8x128xf32>,
    return
  }
  func.func @transform_0(%arg0: i32) -> (i32, i32) {
    %c0_i32 = arith.constant 0 : i32
    %c0_i32_0 = arith.constant 0 : i32
    return %arg0, %c0_i32 : i32, i32
  }
  func.func @transform_1(%arg0: i32) -> (i32, i32) {
    %c0_i32 = arith.constant 0 : i32
    %c0_i32_0 = arith.constant 0 : i32
    %c0_i32_1 = arith.constant 0 : i32
    return %c0_i32, %c0_i32_0 : i32, i32
  }
  func.func @transform_2(%arg0: i32) -> (i32, i32) {
    %c0_i32 = arith.constant 0 : i32
    %c0_i32_0 = arith.constant 0 : i32
    %c0_i32_1 = arith.constant 0 : i32
    return %c0_i32, %c0_i32_0 : i32, i32
  }
  func.func @transform_3(%arg0: i32) -> (i32, i32) {
    %c0_i32 = arith.constant 0 : i32
    %c0_i32_0 = arith.constant 0 : i32
    %c0_i32_1 = arith.constant 0 : i32
    return %c0_i32, %c0_i32_0 : i32, i32
  }
  func.func @transform_4(%arg0: i32) -> (i32, i32) {
    %c0_i32 = arith.constant 0 : i32
    %c0_i32_0 = arith.constant 0 : i32
    %c0_i32_1 = arith.constant 0 : i32
    return %c0_i32, %c0_i32_0 : i32, i32
  }
  func.func @transform_5(%arg0: i32) -> (i32, i32) {
    %c0_i32 = arith.constant 0 : i32
    %c0_i32_0 = arith.constant 0 : i32
    %c0_i32_1 = arith.constant 0 : i32
    return %c0_i32, %c0_i32_0 : i32, i32
  }
  func.func @transform_6(%arg0: i32) -> (i32, i32) {
    %c0_i32 = arith.constant 0 : i32
    %c0_i32_0 = arith.constant 0 : i32
    %c0_i32_1 = arith.constant 0 : i32
    return %c0_i32, %c0_i32_0 : i32, i32
  }
  func.func @transform_7(%arg0: i32) -> (i32, i32) {
    %c0_i32 = arith.constant 0 : i32
    %c0_i32_0 = arith.constant 0 : i32
    %c0_i32_1 = arith.constant 0 : i32
    return %c0_i32, %c0_i32_0 : i32, i32
  }
  func.func @transform_8(%arg0: i32) -> (i32, i32) {
    %c0_i32 = arith.constant 0 : i32
    %c0_i32_0 = arith.constant 0 : i32
    return %arg0, %c0_i32 : i32, i32
  }
}

</mosaic_0001>

<llo_original>
// kernel: tpu_custom_call.1
$region0: #{tpu_custom_call.1}
  #allocation0 [shape = 'u32[]', space=smem, size = 0x4, offset = 0x4, fixed_abs, tag = 'smem constant byte address 0x4 - core index']
  #allocation1 [shape = 'u32[144,128]{1,0:T(1,128)}', space=vmem, size = 0x12000, scoped, tag = 'internal scratch']
  %s0 = inlined_call_operand.hbm [shape: f32[8,12], index: 0, kind: input, shape index: {}]
  %s1 = inlined_call_operand.hbm [shape: f32[12,128], index: 1, kind: input, shape index: {}]
  %s2 = inlined_call_operand.vmem [shape: f32[1,128], index: 2, kind: input, shape index: {}]
  %s3 = inlined_call_operand.hbm [shape: f32[128,128], index: 3, kind: input, shape index: {}]
  %s4 = inlined_call_operand.vmem [shape: f32[1,128], index: 4, kind: input, shape index: {}]
  %s5 = inlined_call_operand.vmem [shape: f32[1,128], index: 5, kind: input, shape index: {}]
  %s6 = inlined_call_operand.vmem [shape: f32[1,128], index: 6, kind: input, shape index: {}]
  %s7 = inlined_call_operand.hbm [shape: f32[128,128], index: 7, kind: input, shape index: {}]
  %s8 = inlined_call_operand.hbm [shape: f32[8,128], index: 8, kind: output, shape index: {}]
  %s9 = sld [smem:[#allocation0]]
  $region58: #{tpu_custom_call.1} parent=0
    _
  %s11 = ssub.s32 1, %s9
  %s12 = scalar_select 0, %s11, %s9
  $region1: #{tpu_custom_call.1} parent=0
    #allocation2 [shape = 'u8[4096]{0}', space=vmem, size = 0x1000, scoped, tag = 'input window, operand 0, single buffered']
    #allocation3 [shape = 's32[1]{0}', space=sflag, size = 0x4, scoped, tag = 'scoped memory for tpu_custom_call.1']
    #allocation4 [shape = 's32[1]{0}', space=sflag, size = 0x4, scoped, tag = 'scoped memory for tpu_custom_call.1']
    #allocation5 [shape = 'u8[8192]{0}', space=vmem, size = 0x2000, scoped, tag = 'input window, operand 1, single buffered']
    #allocation6 [shape = 's32[1]{0}', space=sflag, size = 0x4, scoped, tag = 'scoped memory for tpu_custom_call.1']
    #allocation7 [shape = 'u8[65536]{0}', space=vmem, size = 0x10000, scoped, tag = 'input window, operand 3, single buffered']
    #allocation8 [shape = 'u8[65536]{0}', space=vmem, size = 0x10000, scoped, tag = 'input window, operand 7, single buffered']
    #allocation9 [shape = 's32[1]{0}', space=sflag, size = 0x4, scoped, tag = 'scoped memory for tpu_custom_call.1']
    #allocation10 [shape = 'u8[4096]{0}', space=vmem, size = 0x1000, scoped, tag = 'output window, operand 0, single buffered']
    %13 = vsyncpa [#allocation3], 0
    %14 = vsyncpa [#allocation6], 0
    %15 = vsyncpa [#allocation9], 0
    %16 = vsyncpa [#allocation4], 0
    // Predicated region
    $region2: #{tpu_custom_call.1} parent=1 // pred_check
      _
    $region3: #{tpu_custom_call.1} parent=1 // pred_check_branch
      %18 = sbr.rel (0) target = $region5
    $region4: #{tpu_custom_call.1} parent=1 // pred_region
      %s20 = ssub.s32 128, 128
      %21 = vsyncadd [#allocation3], %s20
      %s23 = sshll.u32 [#allocation2], 4
      %s24 = int_to_ptr.vmem [resolvable:$true] %s23
      %26 = dma.hbm_to_vmem [thread:$0]  %s0, 128, %s24, [#allocation3]
    $region5: #{tpu_custom_call.1} parent=1 // pred_fallthru
      _
    // Predicated region
    $region6: #{tpu_custom_call.1} parent=1 // pred_check
      _
    $region7: #{tpu_custom_call.1} parent=1 // pred_check_branch
      %28 = sbr.rel (0) target = $region9
    $region8: #{tpu_custom_call.1} parent=1 // pred_region
      %s30 = ssub.s32 256, 256
      %31 = vsyncadd [#allocation6], %s30
      %s32 = sshll.u32 [#allocation5], 4
      %s33 = int_to_ptr.vmem [resolvable:$true] %s32
      %38 = dma.hbm_to_vmem [thread:$0]  %s1, 256, %s33, [#allocation6], 128, 128, 8
    $region9: #{tpu_custom_call.1} parent=1 // pred_fallthru
      _
    // Predicated region
    $region10: #{tpu_custom_call.1} parent=1 // pred_check
      _
    $region11: #{tpu_custom_call.1} parent=1 // pred_check_branch
      %40 = sbr.rel (0) target = $region13
    $region12: #{tpu_custom_call.1} parent=1 // pred_region
      _
    $region13: #{tpu_custom_call.1} parent=1 // pred_fallthru
      _
    // Predicated region
    $region14: #{tpu_custom_call.1} parent=1 // pred_check
      _
    $region15: #{tpu_custom_call.1} parent=1 // pred_check_branch
      %42 = sbr.rel (0) target = $region17
    $region16: #{tpu_custom_call.1} parent=1 // pred_region
      %s44 = ssub.s32 2048, 2048
      %45 = vsyncadd [#allocation6], %s44
      %s46 = sshll.u32 [#allocation7], 4
      %s47 = int_to_ptr.vmem [resolvable:$true] %s46
      %52 = dma.hbm_to_vmem [thread:$0]  %s3, 2048, %s47, [#allocation6], 128, 128, 8
    $region17: #{tpu_custom_call.1} parent=1 // pred_fallthru
      _
    // Predicated region
    $region18: #{tpu_custom_call.1} parent=1 // pred_check
      _
    $region19: #{tpu_custom_call.1} parent=1 // pred_check_branch
      %54 = sbr.rel (0) target = $region21
    $region20: #{tpu_custom_call.1} parent=1 // pred_region
      _
    $region21: #{tpu_custom_call.1} parent=1 // pred_fallthru
      _
    // Predicated region
    $region22: #{tpu_custom_call.1} parent=1 // pred_check
      _
    $region23: #{tpu_custom_call.1} parent=1 // pred_check_branch
      %56 = sbr.rel (0) target = $region25
    $region24: #{tpu_custom_call.1} parent=1 // pred_region
      _
    $region25: #{tpu_custom_call.1} parent=1 // pred_fallthru
      _
    // Predicated region
    $region26: #{tpu_custom_call.1} parent=1 // pred_check
      _
    $region27: #{tpu_custom_call.1} parent=1 // pred_check_branch
      %58 = sbr.rel (0) target = $region29
    $region28: #{tpu_custom_call.1} parent=1 // pred_region
      _
    $region29: #{tpu_custom_call.1} parent=1 // pred_fallthru
      _
    // Predicated region
    $region30: #{tpu_custom_call.1} parent=1 // pred_check
      _
    $region31: #{tpu_custom_call.1} parent=1 // pred_check_branch
      %60 = sbr.rel (0) target = $region33
    $region32: #{tpu_custom_call.1} parent=1 // pred_region
      %s62 = ssub.s32 2048, 2048
      %63 = vsyncadd [#allocation9], %s62
      %s64 = sshll.u32 [#allocation8], 4
      %s65 = int_to_ptr.vmem [resolvable:$true] %s64
      %70 = dma.hbm_to_vmem [thread:$0]  %s7, 2048, %s65, [#allocation9], 128, 128, 8
    $region33: #{tpu_custom_call.1} parent=1 // pred_fallthru
      _
    // Predicated region
    $region34: #{tpu_custom_call.1} parent=1 // pred_check
      _
    $region35: #{tpu_custom_call.1} parent=1 // pred_check_branch
      %72 = sbr.rel (0) target = $region37
    $region36: #{tpu_custom_call.1} parent=1 // pred_region
      %73 = dma.done [#allocation3], 128
    $region37: #{tpu_custom_call.1} parent=1 // pred_fallthru
      _
    // Predicated region
    $region38: #{tpu_custom_call.1} parent=1 // pred_check
      _
    $region39: #{tpu_custom_call.1} parent=1 // pred_check_branch
      %75 = sbr.rel (0) target = $region41
    $region40: #{tpu_custom_call.1} parent=1 // pred_region
      %76 = dma.done [#allocation6], 256
    $region41: #{tpu_custom_call.1} parent=1 // pred_fallthru
      _
    // Predicated region
    $region42: #{tpu_custom_call.1} parent=1 // pred_check
      _
    $region43: #{tpu_custom_call.1} parent=1 // pred_check_branch
      %78 = sbr.rel (0) target = $region45
    $region44: #{tpu_custom_call.1} parent=1 // pred_region
      %79 = dma.done [#allocation6], 2048
    $region45: #{tpu_custom_call.1} parent=1 // pred_fallthru
      _
    // Predicated region
    $region46: #{tpu_custom_call.1} parent=1 // pred_check
      _
    $region47: #{tpu_custom_call.1} parent=1 // pred_check_branch
      %81 = sbr.rel (0) target = $region49
    $region48: #{tpu_custom_call.1} parent=1 // pred_region
      %82 = dma.done [#allocation9], 2048
    $region49: #{tpu_custom_call.1} parent=1 // pred_fallthru
      _
    %v83 = vld [vmem:[#allocation2] sm:$0xff]
    %v84 = vld [vmem:[#allocation5] sm:$0xff]
    %v85 = vld [vmem:[#allocation5 + $0x8] sm:$0xf]
    %v86 = vld [vmem:[%s2] sm:$0x1]
    %v88 = vlaneseq
    %v89 = vshrl.u32 %v88, 7
    %v90 = vsub.s32 0, %v89
    %v91 = vrot.slane %v86, %v90
    %vm93 = vcmask 97280
    %v95 = vsel %vm93, %v83, 0
    %vm97 = vcmask 1043456
    %v99 = vsel %vm97, %v85, 0
    %101 = vmatprep.subr.mxu0 0.0
    %102 = vmatpush1.msra.mxu0 %v84
    %103 = vmatprep.subr.mxu0 0.0
    %104 = vmatpush1.msra.mxu0 %v99
    %105 = vmatprep.subr.mxu0 0.0
    %106 = vmatpush1.msra.mxu0 0.0
    %107 = vmatprep.subr.mxu0 0.0
    %108 = vmatpush1.msra.mxu0 0.0
    %109 = vmatprep.subr.mxu0 0.0
    %110 = vmatpush1.msra.mxu0 0.0
    %111 = vmatprep.subr.mxu0 0.0
    %112 = vmatpush1.msra.mxu0 0.0
    %113 = vmatprep.subr.mxu0 0.0
    %114 = vmatpush1.msra.mxu0 0.0
    %115 = vmatprep.subr.mxu0 0.0
    %116 = vmatpush1.msra.mxu0 0.0
    %117 = vmatprep.subr.mxu0 0.0
    %118 = vmatpush1.msra.mxu0 0.0
    %119 = vmatprep.subr.mxu0 0.0
    %120 = vmatpush1.msra.mxu0 0.0
    %121 = vmatprep.subr.mxu0 0.0
    %122 = vmatpush1.msra.mxu0 0.0
    %123 = vmatprep.subr.mxu0 0.0
    %124 = vmatpush1.msra.mxu0 0.0
    %125 = vmatprep.subr.mxu0 0.0
    %126 = vmatpush1.msra.mxu0 0.0
    %127 = vmatprep.subr.mxu0 0.0
    %128 = vmatpush1.msra.mxu0 0.0
    %129 = vmatprep.subr.mxu0 0.0
    %130 = vmatpush1.msra.mxu0 0.0
    %131 = vmatprep.subr.mxu0 0.0
    %132 = vmatpush1.msra.mxu0 0.0
    %133 = vmatprep.subr.mxu0 0.0
    %134 = vmatpush1.msra.mxu0 0.0
    %135 = vmatprep.subr.mxu0 0.0
    %136 = vmatpush1.msra.mxu0 0.0
    %137 = vmatprep.subr.mxu0 0.0
    %138 = vmatpush1.msra.mxu0 0.0
    %139 = vmatprep.subr.mxu0 0.0
    %140 = vmatpush1.msra.mxu0 0.0
    %141 = vmatprep.subr.mxu0 0.0
    %142 = vmatpush1.msra.mxu0 0.0
    %143 = vmatprep.subr.mxu0 0.0
    %144 = vmatpush1.msra.mxu0 0.0
    %145 = vmatprep.subr.mxu0 0.0
    %146 = vmatpush1.msra.mxu0 0.0
    %147 = vmatprep.subr.mxu0 0.0
    %148 = vmatpush1.msra.mxu0 0.0
    %149 = vmatprep.subr.mxu0 0.0
    %150 = vmatpush1.msra.mxu0 0.0
    %151 = vmatprep.subr.mxu0 0.0
    %152 = vmatpush1.msra.mxu0 0.0
    %153 = vmatprep.subr.mxu0 0.0
    %154 = vmatpush1.msra.mxu0 0.0
    %155 = vmatprep.subr.mxu0 0.0
    %156 = vmatpush1.msra.mxu0 0.0
    %157 = vmatprep.subr.mxu0 0.0
    %158 = vmatpush1.msra.mxu0 0.0
    %159 = vmatprep.subr.mxu0 0.0
    %160 = vmatpush1.msra.mxu0 0.0
    %161 = vmatprep.subr.mxu0 0.0
    %162 = vmatpush1.msra.mxu0 0.0
    %163 = vmatprep.subr.mxu0 0.0
    %164 = vmatpush1.msra.mxu0 0.0
    %165 = vmatprep.mubr.f32.mxu0 0.0
    %166 = vmatmul.mubr.f32.gmra.mrb[0].mxu0 %v95
    %v167 = vpop.f32.mrb[0].mxu0
    %v168 = vadd.f32 %v91, %v167
    %v169 = vpop.f32.mrb[0].mxu0
    %170 = vdwg.mxu0
    %v171 = vtanh.pop %v168
    %v172 = vld [vmem:[#allocation7] sm:$0xff]
    %v173 = vld [vmem:[#allocation7 + $0x8] sm:$0xff]
    %v174 = vld [vmem:[#allocation7 + $0x10] sm:$0xff]
    %v175 = vld [vmem:[#allocation7 + $0x18] sm:$0xff]
    %v176 = vld [vmem:[#allocation7 + $0x20] sm:$0xff]
    %v177 = vld [vmem:[#allocation7 + $0x28] sm:$0xff]
    %v178 = vld [vmem:[#allocation7 + $0x30] sm:$0xff]
    %v179 = vld [vmem:[#allocation7 + $0x38] sm:$0xff]
    %v180 = vld [vmem:[#allocation7 + $0x40] sm:$0xff]
    %v181 = vld [vmem:[#allocation7 + $0x48] sm:$0xff]
    %v182 = vld [vmem:[#allocation7 + $0x50] sm:$0xff]
    %v183 = vld [vmem:[#allocation7 + $0x58] sm:$0xff]
    %v184 = vld [vmem:[#allocation7 + $0x60] sm:$0xff]
    %v185 = vld [vmem:[#allocation7 + $0x68] sm:$0xff]
    %v186 = vld [vmem:[#allocation7 + $0x70] sm:$0xff]
    %v187 = vld [vmem:[#allocation7 + $0x78] sm:$0xff]
    %v188 = vld [vmem:[%s4] sm:$0x1]
    %v190 = vlaneseq
    %v191 = vshrl.u32 %v190, 7
    %v192 = vsub.s32 0, %v191
    %v193 = vrot.slane %v188, %v192
    %195 = vmatprep.subr.mxu0 0.0
    %196 = vmatpush1.msra.mxu0 %v172
    %197 = vmatprep.subr.mxu0 0.0
    %198 = vmatpush1.msra.mxu0 %v173
    %199 = vmatprep.subr.mxu0 0.0
    %200 = vmatpush1.msra.mxu0 %v174
    %201 = vmatprep.subr.mxu0 0.0
    %202 = vmatpush1.msra.mxu0 %v175
    %203 = vmatprep.subr.mxu0 0.0
    %204 = vmatpush1.msra.mxu0 %v176
    %205 = vmatprep.subr.mxu0 0.0
    %206 = vmatpush1.msra.mxu0 %v177
    %207 = vmatprep.subr.mxu0 0.0
    %208 = vmatpush1.msra.mxu0 %v178
    %209 = vmatprep.subr.mxu0 0.0
    %210 = vmatpush1.msra.mxu0 %v179
    %211 = vmatprep.subr.mxu0 0.0
    %212 = vmatpush1.msra.mxu0 %v180
    %213 = vmatprep.subr.mxu0 0.0
    %214 = vmatpush1.msra.mxu0 %v181
    %215 = vmatprep.subr.mxu0 0.0
    %216 = vmatpush1.msra.mxu0 %v182
    %217 = vmatprep.subr.mxu0 0.0
    %218 = vmatpush1.msra.mxu0 %v183
    %219 = vmatprep.subr.mxu0 0.0
    %220 = vmatpush1.msra.mxu0 %v184
    %221 = vmatprep.subr.mxu0 0.0
    %222 = vmatpush1.msra.mxu0 %v185
    %223 = vmatprep.subr.mxu0 0.0
    %224 = vmatpush1.msra.mxu0 %v186
    %225 = vmatprep.subr.mxu0 0.0
    %226 = vmatpush1.msra.mxu0 %v187
    %227 = vmatprep.subr.mxu0 0.0
    %228 = vmatpush1.msra.mxu0 0.0
    %229 = vmatprep.subr.mxu0 0.0
    %230 = vmatpush1.msra.mxu0 0.0
    %231 = vmatprep.subr.mxu0 0.0
    %232 = vmatpush1.msra.mxu0 0.0
    %233 = vmatprep.subr.mxu0 0.0
    %234 = vmatpush1.msra.mxu0 0.0
    %235 = vmatprep.subr.mxu0 0.0
    %236 = vmatpush1.msra.mxu0 0.0
    %237 = vmatprep.subr.mxu0 0.0
    %238 = vmatpush1.msra.mxu0 0.0
    %239 = vmatprep.subr.mxu0 0.0
    %240 = vmatpush1.msra.mxu0 0.0
    %241 = vmatprep.subr.mxu0 0.0
    %242 = vmatpush1.msra.mxu0 0.0
    %243 = vmatprep.subr.mxu0 0.0
    %244 = vmatpush1.msra.mxu0 0.0
    %245 = vmatprep.subr.mxu0 0.0
    %246 = vmatpush1.msra.mxu0 0.0
    %247 = vmatprep.subr.mxu0 0.0
    %248 = vmatpush1.msra.mxu0 0.0
    %249 = vmatprep.subr.mxu0 0.0
    %250 = vmatpush1.msra.mxu0 0.0
    %251 = vmatprep.subr.mxu0 0.0
    %252 = vmatpush1.msra.mxu0 0.0
    %253 = vmatprep.subr.mxu0 0.0
    %254 = vmatpush1.msra.mxu0 0.0
    %255 = vmatprep.subr.mxu0 0.0
    %256 = vmatpush1.msra.mxu0 0.0
    %257 = vmatprep.subr.mxu0 0.0
    %258 = vmatpush1.msra.mxu0 0.0
    %259 = vmatprep.mubr.f32.mxu0 0.0
    %260 = vmatmul.mubr.f32.gmra.mrb[0].mxu0 %v171
    %v261 = vpop.f32.mrb[0].mxu0
    %v262 = vadd.f32 %v193, %v261
    %v263 = vpop.f32.mrb[0].mxu0
    %264 = vdwg.mxu0
    %v265 = vld [vmem:[#allocation8] sm:$0xff]
    %v266 = vld [vmem:[#allocation8 + $0x8] sm:$0xff]
    %v267 = vld [vmem:[#allocation8 + $0x10] sm:$0xff]
    %v268 = vld [vmem:[#allocation8 + $0x18] sm:$0xff]
    %v269 = vld [vmem:[#allocation8 + $0x20] sm:$0xff]
    %v270 = vld [vmem:[#allocation8 + $0x28] sm:$0xff]
    %v271 = vld [vmem:[#allocation8 + $0x30] sm:$0xff]
    %v272 = vld [vmem:[#allocation8 + $0x38] sm:$0xff]
    %v273 = vld [vmem:[#allocation8 + $0x40] sm:$0xff]
    %v274 = vld [vmem:[#allocation8 + $0x48] sm:$0xff]
    %v275 = vld [vmem:[#allocation8 + $0x50] sm:$0xff]
    %v276 = vld [vmem:[#allocation8 + $0x58] sm:$0xff]
    %v277 = vld [vmem:[#allocation8 + $0x60] sm:$0xff]
    %v278 = vld [vmem:[#allocation8 + $0x68] sm:$0xff]
    %v279 = vld [vmem:[#allocation8 + $0x70] sm:$0xff]
    %v280 = vld [vmem:[#allocation8 + $0x78] sm:$0xff]
    %281 = vmatprep.subr.mxu0 0.0
    %282 = vmatpush1.msra.mxu0 %v265
    %283 = vmatprep.subr.mxu0 0.0
    %284 = vmatpush1.msra.mxu0 %v266
    %285 = vmatprep.subr.mxu0 0.0
    %286 = vmatpush1.msra.mxu0 %v267
    %287 = vmatprep.subr.mxu0 0.0
    %288 = vmatpush1.msra.mxu0 %v268
    %289 = vmatprep.subr.mxu0 0.0
    %290 = vmatpush1.msra.mxu0 %v269
    %291 = vmatprep.subr.mxu0 0.0
    %292 = vmatpush1.msra.mxu0 %v270
    %293 = vmatprep.subr.mxu0 0.0
    %294 = vmatpush1.msra.mxu0 %v271
    %295 = vmatprep.subr.mxu0 0.0
    %296 = vmatpush1.msra.mxu0 %v272
    %297 = vmatprep.subr.mxu0 0.0
    %298 = vmatpush1.msra.mxu0 %v273
    %299 = vmatprep.subr.mxu0 0.0
    %300 = vmatpush1.msra.mxu0 %v274
    %301 = vmatprep.subr.mxu0 0.0
    %302 = vmatpush1.msra.mxu0 %v275
    %303 = vmatprep.subr.mxu0 0.0
    %304 = vmatpush1.msra.mxu0 %v276
    %305 = vmatprep.subr.mxu0 0.0
    %306 = vmatpush1.msra.mxu0 %v277
    %307 = vmatprep.subr.mxu0 0.0
    %308 = vmatpush1.msra.mxu0 %v278
    %309 = vmatprep.subr.mxu0 0.0
    %310 = vmatpush1.msra.mxu0 %v279
    %311 = vmatprep.subr.mxu0 0.0
    %312 = vmatpush1.msra.mxu0 %v280
    %313 = vmatprep.subr.mxu0 0.0
    %314 = vmatpush1.msra.mxu0 0.0
    %315 = vmatprep.subr.mxu0 0.0
    %316 = vmatpush1.msra.mxu0 0.0
    %317 = vmatprep.subr.mxu0 0.0
    %318 = vmatpush1.msra.mxu0 0.0
    %319 = vmatprep.subr.mxu0 0.0
    %320 = vmatpush1.msra.mxu0 0.0
    %321 = vmatprep.subr.mxu0 0.0
    %322 = vmatpush1.msra.mxu0 0.0
    %323 = vmatprep.subr.mxu0 0.0
    %324 = vmatpush1.msra.mxu0 0.0
    %325 = vmatprep.subr.mxu0 0.0
    %326 = vmatpush1.msra.mxu0 0.0
    %327 = vmatprep.subr.mxu0 0.0
    %328 = vmatpush1.msra.mxu0 0.0
    %329 = vmatprep.subr.mxu0 0.0
    %330 = vmatpush1.msra.mxu0 0.0
    %331 = vmatprep.subr.mxu0 0.0
    %332 = vmatpush1.msra.mxu0 0.0
    %333 = vmatprep.subr.mxu0 0.0
    %334 = vmatpush1.msra.mxu0 0.0
    %335 = vmatprep.subr.mxu0 0.0
    %336 = vmatpush1.msra.mxu0 0.0
    %337 = vmatprep.subr.mxu0 0.0
    %338 = vmatpush1.msra.mxu0 0.0
    %339 = vmatprep.subr.mxu0 0.0
    %340 = vmatpush1.msra.mxu0 0.0
    %341 = vmatprep.subr.mxu0 0.0
    %342 = vmatpush1.msra.mxu0 0.0
    %343 = vmatprep.subr.mxu0 0.0
    %344 = vmatpush1.msra.mxu0 0.0
    %345 = vmatprep.mubr.f32.mxu0 0.0
    %346 = vmatmul.mubr.f32.gmra.mrb[0].mxu0 %v262
    %v347 = vpop.f32.mrb[0].mxu0
    %v348 = vadd.f32 0.0, %v347
    %v349 = vpop.f32.mrb[0].mxu0
    %350 = vdwg.mxu0
    %v351 = vsub.f32 %v262, %v348
    %v352 = vmul.f32 %v351, %v351
    %353 = vmatprep.subr.mxu0 0.0
    %354 = vmatpush1.msra.mxu0 %v265
    %355 = vmatprep.subr.mxu0 0.0
    %356 = vmatpush1.msra.mxu0 %v266
    %357 = vmatprep.subr.mxu0 0.0
    %358 = vmatpush1.msra.mxu0 %v267
    %359 = vmatprep.subr.mxu0 0.0
    %360 = vmatpush1.msra.mxu0 %v268
    %361 = vmatprep.subr.mxu0 0.0
    %362 = vmatpush1.msra.mxu0 %v269
    %363 = vmatprep.subr.mxu0 0.0
    %364 = vmatpush1.msra.mxu0 %v270
    %365 = vmatprep.subr.mxu0 0.0
    %366 = vmatpush1.msra.mxu0 %v271
    %367 = vmatprep.subr.mxu0 0.0
    %368 = vmatpush1.msra.mxu0 %v272
    %369 = vmatprep.subr.mxu0 0.0
    %370 = vmatpush1.msra.mxu0 %v273
    %371 = vmatprep.subr.mxu0 0.0
    %372 = vmatpush1.msra.mxu0 %v274
    %373 = vmatprep.subr.mxu0 0.0
    %374 = vmatpush1.msra.mxu0 %v275
    %375 = vmatprep.subr.mxu0 0.0
    %376 = vmatpush1.msra.mxu0 %v276
    %377 = vmatprep.subr.mxu0 0.0
    %378 = vmatpush1.msra.mxu0 %v277
    %379 = vmatprep.subr.mxu0 0.0
    %380 = vmatpush1.msra.mxu0 %v278
    %381 = vmatprep.subr.mxu0 0.0
    %382 = vmatpush1.msra.mxu0 %v279
    %383 = vmatprep.subr.mxu0 0.0
    %384 = vmatpush1.msra.mxu0 %v280
    %385 = vmatprep.subr.mxu0 0.0
    %386 = vmatpush1.msra.mxu0 0.0
    %387 = vmatprep.subr.mxu0 0.0
    %388 = vmatpush1.msra.mxu0 0.0
    %389 = vmatprep.subr.mxu0 0.0
    %390 = vmatpush1.msra.mxu0 0.0
    %391 = vmatprep.subr.mxu0 0.0
    %392 = vmatpush1.msra.mxu0 0.0
    %393 = vmatprep.subr.mxu0 0.0
    %394 = vmatpush1.msra.mxu0 0.0
    %395 = vmatprep.subr.mxu0 0.0
    %396 = vmatpush1.msra.mxu0 0.0
    %397 = vmatprep.subr.mxu0 0.0
    %398 = vmatpush1.msra.mxu0 0.0
    %399 = vmatprep.subr.mxu0 0.0
    %400 = vmatpush1.msra.mxu0 0.0
    %401 = vmatprep.subr.mxu0 0.0
    %402 = vmatpush1.msra.mxu0 0.0
    %403 = vmatprep.subr.mxu0 0.0
    %404 = vmatpush1.msra.mxu0 0.0
    %405 = vmatprep.subr.mxu0 0.0
    %406 = vmatpush1.msra.mxu0 0.0
    %407 = vmatprep.subr.mxu0 0.0
    %408 = vmatpush1.msra.mxu0 0.0
    %409 = vmatprep.subr.mxu0 0.0
    %410 = vmatpush1.msra.mxu0 0.0
    %411 = vmatprep.subr.mxu0 0.0
    %412 = vmatpush1.msra.mxu0 0.0
    %413 = vmatprep.subr.mxu0 0.0
    %414 = vmatpush1.msra.mxu0 0.0
    %415 = vmatprep.subr.mxu0 0.0
    %416 = vmatpush1.msra.mxu0 0.0
    %417 = vmatprep.mubr.f32.mxu0 0.0
    %418 = vmatmul.mubr.f32.gmra.mrb[0].mxu0 %v352
    %v419 = vpop.f32.mrb[0].mxu0
    %v420 = vadd.f32 1e-05, %v419
    %v421 = vpop.f32.mrb[0].mxu0
    %422 = vdwg.mxu0
    %v423 = vrsqrt.pop %v420
    %v424 = vmul.f32 %v351, %v423
    %v425 = vld [vmem:[%s5] sm:$0x1]
    %v427 = vlaneseq
    %v428 = vshrl.u32 %v427, 7
    %v429 = vsub.s32 0, %v428
    %v430 = vrot.slane %v425, %v429
    %v432 = vmul.f32 %v424, %v430
    %v433 = vld [vmem:[%s6] sm:$0x1]
    %v435 = vlaneseq
    %v436 = vshrl.u32 %v435, 7
    %v437 = vsub.s32 0, %v436
    %v438 = vrot.slane %v433, %v437
    %v440 = vadd.f32 %v432, %v438
    %441 = vst [vmem:[#allocation10] sm:$0xff] %v440
    // Predicated region
    $region50: #{tpu_custom_call.1} parent=1 // pred_check
      _
    $region51: #{tpu_custom_call.1} parent=1 // pred_check_branch
      %443 = sbr.rel (0) target = $region53
    $region52: #{tpu_custom_call.1} parent=1 // pred_region
      %s445 = ssub.s32 128, 128
      %446 = vsyncadd [#allocation4], %s445
      %s448 = sshll.u32 [#allocation10], 4
      %s449 = int_to_ptr.vmem [resolvable:$true] %s448
      %451 = dma.vmem_to_hbm [thread:$0]  %s449, 128, %s8, [#allocation4]
    $region53: #{tpu_custom_call.1} parent=1 // pred_fallthru
      _
    // Predicated region
    $region54: #{tpu_custom_call.1} parent=1 // pred_check
      _
    $region55: #{tpu_custom_call.1} parent=1 // pred_check_branch
      %453 = sbr.rel (0) target = $region57
    $region56: #{tpu_custom_call.1} parent=1 // pred_region
      %454 = dma.done [#allocation4], 128
    $region57: #{tpu_custom_call.1} parent=1 // pred_fallthru
      _
    %455 = vsyncpa [#allocation3], 1
    %456 = vsyncpa [#allocation6], 1
    %457 = vsyncpa [#allocation9], 1
    %458 = vsyncpa [#allocation4], 1

</llo_original>
